<compile_context>
chip_gen: v7x
topology: tpu7x:2x2x1
jax: 0.10.0
libtpu: 0.0.40
codegen_flags: <defaults>
</compile_context>

<pallas_src>
import functools

import jax
import jax.numpy as jnp
from jax.experimental import pallas as pl
from jax.experimental.pallas import tpu as pltpu

BN_EPS = 1e-5


def _decoder_mlp_kernel(*refs, num_layers):
    """Fully fused decoder MLP: num_layers x (Linear -> BN(train) -> ReLU).

    refs layout: (x_ref, w_0, gamma_0, beta_0, ..., w_{L-1}, gamma_{L-1},
                  beta_{L-1}, o_ref).  All tensors are resident in VMEM; the
    inter-layer activation lives only in vregs/VMEM, never in HBM.
    """
    x_ref = refs[0]
    o_ref = refs[-1]
    param_refs = refs[1:-1]

    x = x_ref[...]                      # (B, D_in), bf16 (or native dtype)
    n = x.shape[0]
    inv_n = 1.0 / n                     # hoisted scalar (trace-time constant)

    for li in range(num_layers):
        w_ref, gamma_ref, beta_ref = param_refs[3 * li:3 * li + 3]
        w = w_ref[...]                                          # (Din, Dout) bf16

        # Linear (bf16 MXU operands, f32 accumulation).  Bias omitted: it is
        # cancelled exactly by the BN mean subtraction below.
        y = jnp.dot(x.astype(w.dtype), w,
                    preferred_element_type=jnp.float32)         # (B, Dout) f32

        # BatchNorm1d, training semantics: biased batch statistics over batch.
        mean = jnp.sum(y, axis=0, keepdims=True) * inv_n        # (1, Dout)
        diff = y - mean
        var = jnp.sum(diff * diff, axis=0, keepdims=True) * inv_n
        y_hat = diff * jax.lax.rsqrt(var + BN_EPS)

        out = (gamma_ref[...].astype(jnp.float32) * y_hat
               + beta_ref[...].astype(jnp.float32))

        # ReLU (kept in f32 for the next layer's BN math)
        x = jnp.maximum(out, 0.0)

    o_ref[...] = x.astype(o_ref.dtype)


def decoder_forward(z, params):
    """Decoder.forward(z) with conditional=False: x = MLP(z), one pallas_call."""
    B = z.shape[0]
    if B < 2:
        # PyTorch BatchNorm1d raises for batch size 1 in training mode.
        raise ValueError("training-mode BatchNorm requires batch size > 1")

    flat_params = []
    for (w, gamma, beta) in params:
        flat_params += [w, gamma, beta]
    d_out = params[-1][0].shape[1]

    # Cast the input once in the wrapper so the kernel's first matmul gets
    # native bf16 operands (halves activation DMA bytes as well).
    z_in = z.astype(params[0][0].dtype)

    kernel = functools.partial(_decoder_mlp_kernel, num_layers=len(params))
    full = lambda shape: pl.BlockSpec(shape, lambda: (0,) * len(shape))

    return pl.pallas_call(
        kernel,
        out_shape=jax.ShapeDtypeStruct((B, d_out), jnp.float32),
        grid=(),
        in_specs=[full(z_in.shape)] + [full(a.shape) for a in flat_params],
        out_specs=full((B, d_out)),
        compiler_params=pltpu.CompilerParams(
            vmem_limit_bytes=32 * 1024 * 1024),
    )(z_in, *flat_params)


def init_decoder_params(key, latent_size, layer_sizes):
    """Deterministic synthetic parameters (shapes match nn.Linear / BatchNorm1d).

    Linear bias is intentionally not materialised: under training-mode
    BatchNorm it has no effect on the forward output.
    Weights are stored in bf16 for the native MXU path; BN affine in f32.
    """
    dims = [latent_size] + list(layer_sizes)
    params = []
    for i, (d_in, d_out) in enumerate(zip(dims[:-1], dims[1:])):
        kw = jax.random.fold_in(key, i)
        bound = 1.0 / (d_in ** 0.5)  # PyTorch Linear default init range
        w = jax.random.uniform(kw, (d_in, d_out), jnp.float32, -bound, bound)
        w = w.astype(jnp.bfloat16)
        gamma = jnp.ones((1, d_out), jnp.float32)   # BatchNorm1d weight
        beta = jnp.zeros((1, d_out), jnp.float32)   # BatchNorm1d bias
        params.append((w, gamma, beta))
    return params


def decoder_forward_ref(z, params):
    """Pure-JAX reference with identical math (for correctness check only)."""
    x = z
    for (w, gamma, beta) in params:
        y = jnp.dot(x.astype(w.dtype), w,
                    preferred_element_type=jnp.float32)
        mean = jnp.mean(y, axis=0, keepdims=True)
        var = jnp.mean((y - mean) ** 2, axis=0, keepdims=True)
        y_hat = (y - mean) * jax.lax.rsqrt(var + BN_EPS)
        x = jnp.maximum(gamma * y_hat + beta, 0.0)
    return x


if __name__ == "__main__":
    # Small shapes consistent with the module: batch=8, latent=32, layers=[64, 128]
    batch = 8
    latent_size = 32
    layer_sizes = [64, 128]

    key = jax.random.PRNGKey(0)
    k_z, k_p = jax.random.split(key)
    z = jax.random.normal(k_z, (batch, latent_size), jnp.float32)
    params = init_decoder_params(k_p, latent_size, layer_sizes)

    out = decoder_forward(z, params)
    out = jax.block_until_ready(out)

    assert out.shape == (batch, layer_sizes[-1])
    assert bool(jnp.all(jnp.isfinite(out)))

    ref = decoder_forward_ref(z, params)
    assert bool(jnp.allclose(out, ref, atol=1e-2, rtol=1e-2))

    print("KERNEL_OK")
</pallas_src>

<mosaic_0001>
module attributes {stable_mosaic.version = 11 : i64} {
  func.func @_decoder_mlp_kernel(%arg0: memref<8x32xbf16, #tpu.memory_space<vmem>>, %arg1: memref<32x64xbf16, #tpu.memory_space<vmem>>, %arg2: memref<1x64xf32, #tpu.memory_space<vmem>>, %arg3: memref<1x64xf32, #tpu.memory_space<vmem>>, %arg4: memref<64x128xbf16, #tpu.memory_space<vmem>>, %arg5: memref<1x128xf32, #tpu.memory_space<vmem>>, %arg6: memref<1x128xf32, #tpu.memory_space<vmem>>, %arg7: memref<8x128xf32, #tpu.memory_space<vmem>>) attributes {dimension_semantics = [], scalar_prefetch = 0 : i64, scratch_operands = 0 : i64, tpu.core_type = #tpu.core_type<tc>} {
    %c0 = arith.constant 0 : index
    %c0_0 = arith.constant 0 : index
    %0 = vector.load %arg0[%c0, %c0_0] : memref<8x32xbf16, #tpu.memory_space<vmem>>, vector<8x32xbf16>
    %c0_1 = arith.constant 0 : index
    %c0_2 = arith.constant 0 : index
    %1 = vector.load %arg1[%c0_1, %c0_2] : memref<32x64xbf16, #tpu.memory_space<vmem>>, vector<32x64xbf16>
    %cst = arith.constant dense<0.000000e+00> : vector<8x64xf32>
    %2 = tpu.matmul %0, %1, %cst {dimension_numbers = #tpu.dot_dimension_numbers<[1], [0], [0], [1], [0, 0, 1, 1], [], []>} : vector<8x32xbf16>, vector<32x64xbf16>, vector<8x64xf32> -> vector<8x64xf32>
    %cst_3 = arith.constant dense<0.000000e+00> : vector<64xf32>
    %3 = vector.multi_reduction <add>, %2, %cst_3 [0] : vector<8x64xf32> to vector<64xf32>
    %4 = vector.shape_cast %3 : vector<64xf32> to vector<1x64xf32>
    %cst_4 = arith.constant 1.250000e-01 : f32
    %5 = vector.broadcast %cst_4 : f32 to vector<1x64xf32>
    %6 = arith.mulf %4, %5 : vector<1x64xf32>
    %7 = vector.broadcast %6 : vector<1x64xf32> to vector<8x64xf32>
    %8 = arith.subf %2, %7 : vector<8x64xf32>
    %9 = arith.mulf %8, %8 : vector<8x64xf32>
    %cst_5 = arith.constant dense<0.000000e+00> : vector<64xf32>
    %10 = vector.multi_reduction <add>, %9, %cst_5 [0] : vector<8x64xf32> to vector<64xf32>
    %11 = vector.shape_cast %10 : vector<64xf32> to vector<1x64xf32>
    %cst_6 = arith.constant 1.250000e-01 : f32
    %12 = vector.broadcast %cst_6 : f32 to vector<1x64xf32>
    %13 = arith.mulf %11, %12 : vector<1x64xf32>
    %cst_7 = arith.constant 9.99999974E-6 : f32
    %14 = vector.broadcast %cst_7 : f32 to vector<1x64xf32>
    %15 = arith.addf %13, %14 : vector<1x64xf32>
    %16 = math.rsqrt %15 : vector<1x64xf32>
    %17 = vector.broadcast %16 : vector<1x64xf32> to vector<8x64xf32>
    %18 = arith.mulf %8, %17 : vector<8x64xf32>
    %c0_8 = arith.constant 0 : index
    %c0_9 = arith.constant 0 : index
    %19 = vector.load %arg2[%c0_8, %c0_9] : memref<1x64xf32, #tpu.memory_space<vmem>>, vector<1x64xf32>
    %20 = vector.broadcast %19 : vector<1x64xf32> to vector<8x64xf32>
    %21 = arith.mulf %20, %18 : vector<8x64xf32>
    %c0_10 = arith.constant 0 : index
    %c0_11 = arith.constant 0 : index
    %22 = vector.load %arg3[%c0_10, %c0_11] : memref<1x64xf32, #tpu.memory_space<vmem>>, vector<1x64xf32>
    %23 = vector.broadcast %22 : vector<1x64xf32> to vector<8x64xf32>
    %24 = arith.addf %21, %23 : vector<8x64xf32>
    %cst_12 = arith.constant 0.000000e+00 : f32
    %25 = vector.broadcast %cst_12 : f32 to vector<8x64xf32>
    %26 = arith.maximumf %24, %25 : vector<8x64xf32>
    %c0_13 = arith.constant 0 : index
    %c0_14 = arith.constant 0 : index
    %27 = vector.load %arg4[%c0_13, %c0_14] : memref<64x128xbf16, #tpu.memory_space<vmem>>, vector<64x128xbf16>
    %28 = arith.truncf %26 : vector<8x64xf32> to vector<8x64xbf16>
    %cst_15 = arith.constant dense<0.000000e+00> : vector<8x128xf32>
    %29 = tpu.matmul %28, %27, %cst_15 {dimension_numbers = #tpu.dot_dimension_numbers<[1], [0], [0], [1], [0, 0, 1, 1], [], []>} : vector<8x64xbf16>, vector<64x128xbf16>, vector<8x128xf32> -> vector<8x128xf32>
    %cst_16 = arith.constant dense<0.000000e+00> : vector<128xf32>
    %30 = vector.multi_reduction <add>, %29, %cst_16 [0] : vector<8x128xf32> to vector<128xf32>
    %31 = vector.shape_cast %30 : vector<128xf32> to vector<1x128xf32>
    %cst_17 = arith.constant 1.250000e-01 : f32
    %32 = vector.broadcast %cst_17 : f32 to vector<1x128xf32>
    %33 = arith.mulf %31, %32 : vector<1x128xf32>
    %34 = vector.broadcast %33 : vector<1x128xf32> to vector<8x128xf32>
    %35 = arith.subf %29, %34 : vector<8x128xf32>
    %36 = arith.mulf %35, %35 : vector<8x128xf32>
    %cst_18 = arith.constant dense<0.000000e+00> : vector<128xf32>
    %37 = vector.multi_reduction <add>, %36, %cst_18 [0] : vector<8x128xf32> to vector<128xf32>
    %38 = vector.shape_cast %37 : vector<128xf32> to vector<1x128xf32>
    %cst_19 = arith.constant 1.250000e-01 : f32
    %39 = vector.broadcast %cst_19 : f32 to vector<1x128xf32>
    %40 = arith.mulf %38, %39 : vector<1x128xf32>
    %cst_20 = arith.constant 9.99999974E-6 : f32
    %41 = vector.broadcast %cst_20 : f32 to vector<1x128xf32>
    %42 = arith.addf %40, %41 : vector<1x128xf32>
    %43 = math.rsqrt %42 : vector<1x128xf32>
    %44 = vector.broadcast %43 : vector<1x128xf32> to vector<8x128xf32>
    %45 = arith.mulf %35, %44 : vector<8x128xf32>
    %c0_21 = arith.constant 0 : index
    %c0_22 = arith.constant 0 : index
    %46 = vector.load %arg5[%c0_21, %c0_22] : memref<1x128xf32, #tpu.memory_space<vmem>>, vector<1x128xf32>
    %47 = vector.broadcast %46 : vector<1x128xf32> to vector<8x128xf32>
    %48 = arith.mulf %47, %45 : vector<8x128xf32>
    %c0_23 = arith.constant 0 : index
    %c0_24 = arith.constant 0 : index
    %49 = vector.load %arg6[%c0_23, %c0_24] : memref<1x128xf32, #tpu.memory_space<vmem>>, vector<1x128xf32>
    %50 = vector.broadcast %49 : vector<1x128xf32> to vector<8x128xf32>
    %51 = arith.addf %48, %50 : vector<8x128xf32>
    %cst_25 = arith.constant 0.000000e+00 : f32
    %52 = vector.broadcast %cst_25 : f32 to vector<8x128xf32>
    %53 = arith.maximumf %51, %52 : vector<8x128xf32>
    %c0_26 = arith.constant 0 : index
    %c0_27 = arith.constant 0 : index
    %54 = vector.load %arg7[%c0_26, %c0_27] : memref<8x128xf32, #tpu.memory_space<vmem>>, vector<8x128xf32>
    tpu.vector_store %arg7[%c0_26, %c0_27], %53 {strides = array<i32>} : memref<8x128xf32, #tpu.memory_space<vmem>>, vector<8x128xf32>,
    return
  }
}

</mosaic_0001>

<llo_original>
// kernel: tpu_custom_call.1
$region0: #{tpu_custom_call.1}
  #allocation0 [shape = 'u32[]', space=smem, size = 0x4, offset = 0x4, fixed_abs, tag = 'smem constant byte address 0x4 - core index']
  #allocation1 [shape = 'u32[144,128]{1,0:T(1,128)}', space=vmem, size = 0x12000, scoped, tag = 'internal scratch']
  %s0 = inlined_call_operand.hbm [shape: bf16[8,32], index: 0, kind: input, shape index: {}]
  %s1 = inlined_call_operand.hbm [shape: bf16[32,64], index: 1, kind: input, shape index: {}]
  %s2 = inlined_call_operand.vmem [shape: f32[1,64], index: 2, kind: input, shape index: {}]
  %s3 = inlined_call_operand.vmem [shape: f32[1,64], index: 3, kind: input, shape index: {}]
  %s4 = inlined_call_operand.hbm [shape: bf16[64,128], index: 4, kind: input, shape index: {}]
  %s5 = inlined_call_operand.vmem [shape: f32[1,128], index: 5, kind: input, shape index: {}]
  %s6 = inlined_call_operand.vmem [shape: f32[1,128], index: 6, kind: input, shape index: {}]
  %s7 = inlined_call_operand.hbm [shape: f32[8,128], index: 7, kind: output, shape index: {}]
  %s8 = sld [smem:[#allocation0]]
  $region50: #{tpu_custom_call.1} parent=0
    _
  %s10 = ssub.s32 1, %s8
  %s11 = scalar_select 0, %s10, %s8
  $region1: #{tpu_custom_call.1} parent=0
    #allocation2 [shape = 'u8[2048]{0}', space=vmem, size = 0x800, scoped, tag = 'input window, operand 0, single buffered']
    #allocation3 [shape = 's32[1]{0}', space=sflag, size = 0x4, scoped, tag = 'scoped memory for tpu_custom_call.1']
    #allocation4 [shape = 's32[1]{0}', space=sflag, size = 0x4, scoped, tag = 'scoped memory for tpu_custom_call.1']
    #allocation5 [shape = 'u8[8192]{0}', space=vmem, size = 0x2000, scoped, tag = 'input window, operand 1, single buffered']
    #allocation6 [shape = 's32[1]{0}', space=sflag, size = 0x4, scoped, tag = 'scoped memory for tpu_custom_call.1']
    #allocation7 [shape = 'u8[16384]{0}', space=vmem, size = 0x4000, scoped, tag = 'input window, operand 4, single buffered']
    #allocation8 [shape = 'u8[4096]{0}', space=vmem, size = 0x1000, scoped, tag = 'output window, operand 0, single buffered']
    %12 = vsyncpa [#allocation3], 0
    %13 = vsyncpa [#allocation6], 0
    %14 = vsyncpa [#allocation4], 0
    // Predicated region
    $region2: #{tpu_custom_call.1} parent=1 // pred_check
      _
    $region3: #{tpu_custom_call.1} parent=1 // pred_check_branch
      %16 = sbr.rel (0) target = $region5
    $region4: #{tpu_custom_call.1} parent=1 // pred_region
      %s18 = ssub.s32 64, 64
      %19 = vsyncadd [#allocation3], %s18
      %s21 = sshll.u32 [#allocation2], 4
      %s22 = int_to_ptr.vmem [resolvable:$true] %s21
      %24 = dma.hbm_to_vmem [thread:$0]  %s0, 64, %s22, [#allocation3]
    $region5: #{tpu_custom_call.1} parent=1 // pred_fallthru
      _
    // Predicated region
    $region6: #{tpu_custom_call.1} parent=1 // pred_check
      _
    $region7: #{tpu_custom_call.1} parent=1 // pred_check_branch
      %26 = sbr.rel (0) target = $region9
    $region8: #{tpu_custom_call.1} parent=1 // pred_region
      %s28 = ssub.s32 256, 256
      %29 = vsyncadd [#allocation6], %s28
      %s30 = sshll.u32 [#allocation5], 4
      %s31 = int_to_ptr.vmem [resolvable:$true] %s30
      %36 = dma.hbm_to_vmem [thread:$0]  %s1, 256, %s31, [#allocation6], 64, 64, 4
    $region9: #{tpu_custom_call.1} parent=1 // pred_fallthru
      _
    // Predicated region
    $region10: #{tpu_custom_call.1} parent=1 // pred_check
      _
    $region11: #{tpu_custom_call.1} parent=1 // pred_check_branch
      %38 = sbr.rel (0) target = $region13
    $region12: #{tpu_custom_call.1} parent=1 // pred_region
      _
    $region13: #{tpu_custom_call.1} parent=1 // pred_fallthru
      _
    // Predicated region
    $region14: #{tpu_custom_call.1} parent=1 // pred_check
      _
    $region15: #{tpu_custom_call.1} parent=1 // pred_check_branch
      %40 = sbr.rel (0) target = $region17
    $region16: #{tpu_custom_call.1} parent=1 // pred_region
      _
    $region17: #{tpu_custom_call.1} parent=1 // pred_fallthru
      _
    // Predicated region
    $region18: #{tpu_custom_call.1} parent=1 // pred_check
      _
    $region19: #{tpu_custom_call.1} parent=1 // pred_check_branch
      %42 = sbr.rel (0) target = $region21
    $region20: #{tpu_custom_call.1} parent=1 // pred_region
      %s44 = ssub.s32 512, 512
      %45 = vsyncadd [#allocation6], %s44
      %s46 = sshll.u32 [#allocation7], 4
      %s47 = int_to_ptr.vmem [resolvable:$true] %s46
      %52 = dma.hbm_to_vmem [thread:$0]  %s4, 512, %s47, [#allocation6], 64, 64, 4
    $region21: #{tpu_custom_call.1} parent=1 // pred_fallthru
      _
    // Predicated region
    $region22: #{tpu_custom_call.1} parent=1 // pred_check
      _
    $region23: #{tpu_custom_call.1} parent=1 // pred_check_branch
      %54 = sbr.rel (0) target = $region25
    $region24: #{tpu_custom_call.1} parent=1 // pred_region
      _
    $region25: #{tpu_custom_call.1} parent=1 // pred_fallthru
      _
    // Predicated region
    $region26: #{tpu_custom_call.1} parent=1 // pred_check
      _
    $region27: #{tpu_custom_call.1} parent=1 // pred_check_branch
      %56 = sbr.rel (0) target = $region29
    $region28: #{tpu_custom_call.1} parent=1 // pred_region
      _
    $region29: #{tpu_custom_call.1} parent=1 // pred_fallthru
      _
    // Predicated region
    $region30: #{tpu_custom_call.1} parent=1 // pred_check
      _
    $region31: #{tpu_custom_call.1} parent=1 // pred_check_branch
      %58 = sbr.rel (0) target = $region33
    $region32: #{tpu_custom_call.1} parent=1 // pred_region
      %59 = dma.done [#allocation3], 64
    $region33: #{tpu_custom_call.1} parent=1 // pred_fallthru
      _
    // Predicated region
    $region34: #{tpu_custom_call.1} parent=1 // pred_check
      _
    $region35: #{tpu_custom_call.1} parent=1 // pred_check_branch
      %61 = sbr.rel (0) target = $region37
    $region36: #{tpu_custom_call.1} parent=1 // pred_region
      %62 = dma.done [#allocation6], 256
    $region37: #{tpu_custom_call.1} parent=1 // pred_fallthru
      _
    // Predicated region
    $region38: #{tpu_custom_call.1} parent=1 // pred_check
      _
    $region39: #{tpu_custom_call.1} parent=1 // pred_check_branch
      %64 = sbr.rel (0) target = $region41
    $region40: #{tpu_custom_call.1} parent=1 // pred_region
      %65 = dma.done [#allocation6], 512
    $region41: #{tpu_custom_call.1} parent=1 // pred_fallthru
      _
    %v67 = vld [vmem:[#allocation2] sm:$0xf]
    %v68 = vld [vmem:[#allocation5] sm:$0xf]
    %v69 = vld [vmem:[#allocation5 + $0x4] sm:$0xf]
    %v70 = vld [vmem:[#allocation5 + $0x8] sm:$0xf]
    %v71 = vld [vmem:[#allocation5 + $0xc] sm:$0xf]
    %v76 = vunpack.c.l.b16 %v68
    %v77 = vunpack.c.l.b16 %v69
    %v78 = vunpack.c.l.b16 %v70
    %v79 = vunpack.c.l.b16 %v71
    %v80 = vpack.c.b16 %v77, %v76
    %v81 = vpack.c.b16 %v79, %v78
    %vm84 = vcmask 261120
    %v86 = vsel %vm84, %v67, 0
    %88 = vmatprep.subr.bf16.mxu0 0
    %89 = vmatpush1.bf16.msra.mxu0 %v80
    %90 = vmatprep.subr.bf16.mxu0 0
    %91 = vmatpush1.bf16.msra.mxu0 %v81
    %92 = vmatprep.subr.bf16.mxu0 0
    %93 = vmatpush1.bf16.msra.mxu0 0
    %94 = vmatprep.subr.bf16.mxu0 0
    %95 = vmatpush1.bf16.msra.mxu0 0
    %96 = vmatprep.subr.bf16.mxu0 0
    %97 = vmatpush1.bf16.msra.mxu0 0
    %98 = vmatprep.subr.bf16.mxu0 0
    %99 = vmatpush1.bf16.msra.mxu0 0
    %100 = vmatprep.subr.bf16.mxu0 0
    %101 = vmatpush1.bf16.msra.mxu0 0
    %102 = vmatprep.subr.bf16.mxu0 0
    %103 = vmatpush1.bf16.msra.mxu0 0
    %104 = vmatprep.subr.bf16.mxu0 0
    %105 = vmatpush1.bf16.msra.mxu0 0
    %106 = vmatprep.subr.bf16.mxu0 0
    %107 = vmatpush1.bf16.msra.mxu0 0
    %108 = vmatprep.subr.bf16.mxu0 0
    %109 = vmatpush1.bf16.msra.mxu0 0
    %110 = vmatprep.subr.bf16.mxu0 0
    %111 = vmatpush1.bf16.msra.mxu0 0
    %112 = vmatprep.subr.bf16.mxu0 0
    %113 = vmatpush1.bf16.msra.mxu0 0
    %114 = vmatprep.subr.bf16.mxu0 0
    %115 = vmatpush1.bf16.msra.mxu0 0
    %116 = vmatprep.subr.bf16.mxu0 0
    %117 = vmatpush1.bf16.msra.mxu0 0
    %118 = vmatprep.subr.bf16.mxu0 0
    %119 = vmatpush1.bf16.msra.mxu0 0
    %120 = vmatprep.mubr.bf16.mxu0 0
    %121 = vmatmul.mubr.bf16.gmra.mrb[0].mxu0 %v86
    %v122 = vpop.f32.mrb[0].mxu0
    %v123 = vadd.f32 0.0, %v122
    %v124 = vpop.f32.mrb[0].mxu0
    %v125 = vpop.f32.mrb[0].mxu0
    %v126 = vpop.f32.mrb[0].mxu0
    %127 = vdwg.mxu0
    %vm128 = vcmask 523264
    %v129 = vsel %vm128, %v123, 0.0
    %v130 = vrot.slane %v129, 4
    %v131 = vadd.f32 %v129, %v130
    %v132 = vrot.slane %v131, 2
    %v133 = vadd.f32 %v131, %v132
    %v134 = vrot.slane %v133, 1
    %v135 = vadd.f32 %v133, %v134
    %v136 = vmul.f32 %v135, 0.125
    %v137 = vsub.f32 %v123, %v136
    %v138 = vmul.f32 %v137, %v137
    %v139 = vsel %vm128, %v138, 0.0
    %v140 = vrot.slane %v139, 4
    %v141 = vadd.f32 %v139, %v140
    %v142 = vrot.slane %v141, 2
    %v143 = vadd.f32 %v141, %v142
    %v144 = vrot.slane %v143, 1
    %v145 = vadd.f32 %v143, %v144
    %v146 = vmul.f32 %v145, 0.125
    %v147 = vadd.f32 %v146, 1e-05
    %v148 = vrsqrt.pop %v147
    %v149 = vmul.f32 %v137, %v148
    %v150 = vld [vmem:[%s2] sm:$0x1]
    %v152 = vlaneseq
    %v153 = vshrl.u32 %v152, 7
    %v154 = vsub.s32 0, %v153
    %v155 = vrot.slane %v150, %v154
    %v157 = vmul.f32 %v155, %v149
    %v158 = vld [vmem:[%s3] sm:$0x1]
    %v160 = vlaneseq
    %v161 = vshrl.u32 %v160, 7
    %v162 = vsub.s32 0, %v161
    %v163 = vrot.slane %v158, %v162
    %v165 = vadd.f32 %v157, %v163
    %v166 = vmax.f32 %v165, 0.0
    %v167 = vld [vmem:[#allocation7] sm:$0xf]
    %v168 = vld [vmem:[#allocation7 + $0x4] sm:$0xf]
    %v169 = vld [vmem:[#allocation7 + $0x8] sm:$0xf]
    %v170 = vld [vmem:[#allocation7 + $0xc] sm:$0xf]
    %v171 = vld [vmem:[#allocation7 + $0x10] sm:$0xf]
    %v172 = vld [vmem:[#allocation7 + $0x14] sm:$0xf]
    %v173 = vld [vmem:[#allocation7 + $0x18] sm:$0xf]
    %v174 = vld [vmem:[#allocation7 + $0x1c] sm:$0xf]
    %v175 = vpack.c.bf16 %v166, %v166
    %v184 = vunpack.c.l.b16 %v167
    %v185 = vunpack.c.l.b16 %v168
    %v186 = vunpack.c.l.b16 %v169
    %v187 = vunpack.c.l.b16 %v170
    %v188 = vunpack.c.l.b16 %v171
    %v189 = vunpack.c.l.b16 %v172
    %v190 = vunpack.c.l.b16 %v173
    %v191 = vunpack.c.l.b16 %v174
    %v192 = vpack.c.b16 %v185, %v184
    %v193 = vpack.c.b16 %v187, %v186
    %v194 = vpack.c.b16 %v189, %v188
    %v195 = vpack.c.b16 %v191, %v190
    %v201 = vsel %vm128, %v175, 0
    %203 = vmatprep.subr.bf16.mxu0 0
    %204 = vmatpush1.bf16.msra.mxu0 %v192
    %205 = vmatprep.subr.bf16.mxu0 0
    %206 = vmatpush1.bf16.msra.mxu0 %v193
    %207 = vmatprep.subr.bf16.mxu0 0
    %208 = vmatpush1.bf16.msra.mxu0 %v194
    %209 = vmatprep.subr.bf16.mxu0 0
    %210 = vmatpush1.bf16.msra.mxu0 %v195
    %211 = vmatprep.subr.bf16.mxu0 0
    %212 = vmatpush1.bf16.msra.mxu0 0
    %213 = vmatprep.subr.bf16.mxu0 0
    %214 = vmatpush1.bf16.msra.mxu0 0
    %215 = vmatprep.subr.bf16.mxu0 0
    %216 = vmatpush1.bf16.msra.mxu0 0
    %217 = vmatprep.subr.bf16.mxu0 0
    %218 = vmatpush1.bf16.msra.mxu0 0
    %219 = vmatprep.subr.bf16.mxu0 0
    %220 = vmatpush1.bf16.msra.mxu0 0
    %221 = vmatprep.subr.bf16.mxu0 0
    %222 = vmatpush1.bf16.msra.mxu0 0
    %223 = vmatprep.subr.bf16.mxu0 0
    %224 = vmatpush1.bf16.msra.mxu0 0
    %225 = vmatprep.subr.bf16.mxu0 0
    %226 = vmatpush1.bf16.msra.mxu0 0
    %227 = vmatprep.subr.bf16.mxu0 0
    %228 = vmatpush1.bf16.msra.mxu0 0
    %229 = vmatprep.subr.bf16.mxu0 0
    %230 = vmatpush1.bf16.msra.mxu0 0
    %231 = vmatprep.subr.bf16.mxu0 0
    %232 = vmatpush1.bf16.msra.mxu0 0
    %233 = vmatprep.subr.bf16.mxu0 0
    %234 = vmatpush1.bf16.msra.mxu0 0
    %235 = vmatprep.mubr.bf16.mxu0 0
    %236 = vmatmul.mubr.bf16.gmra.mrb[0].mxu0 %v201
    %v237 = vpop.f32.mrb[0].mxu0
    %v238 = vadd.f32 0.0, %v237
    %v239 = vpop.f32.mrb[0].mxu0
    %v240 = vpop.f32.mrb[0].mxu0
    %v241 = vpop.f32.mrb[0].mxu0
    %242 = vdwg.mxu0
    %v243 = vrot.slane %v238, 4
    %v244 = vadd.f32 %v238, %v243
    %v245 = vrot.slane %v244, 2
    %v246 = vadd.f32 %v244, %v245
    %v247 = vrot.slane %v246, 1
    %v248 = vadd.f32 %v246, %v247
    %v249 = vmul.f32 %v248, 0.125
    %v250 = vsub.f32 %v238, %v249
    %v251 = vmul.f32 %v250, %v250
    %v252 = vrot.slane %v251, 4
    %v253 = vadd.f32 %v251, %v252
    %v254 = vrot.slane %v253, 2
    %v255 = vadd.f32 %v253, %v254
    %v256 = vrot.slane %v255, 1
    %v257 = vadd.f32 %v255, %v256
    %v258 = vmul.f32 %v257, 0.125
    %v259 = vadd.f32 %v258, 1e-05
    %v260 = vrsqrt.pop %v259
    %v261 = vmul.f32 %v250, %v260
    %v262 = vld [vmem:[%s5] sm:$0x1]
    %v264 = vlaneseq
    %v265 = vshrl.u32 %v264, 7
    %v266 = vsub.s32 0, %v265
    %v267 = vrot.slane %v262, %v266
    %v269 = vmul.f32 %v267, %v261
    %v270 = vld [vmem:[%s6] sm:$0x1]
    %v272 = vlaneseq
    %v273 = vshrl.u32 %v272, 7
    %v274 = vsub.s32 0, %v273
    %v275 = vrot.slane %v270, %v274
    %v277 = vadd.f32 %v269, %v275
    %v278 = vmax.f32 %v277, 0.0
    %279 = vst [vmem:[#allocation8] sm:$0xff] %v278
    // Predicated region
    $region42: #{tpu_custom_call.1} parent=1 // pred_check
      _
    $region43: #{tpu_custom_call.1} parent=1 // pred_check_branch
      %281 = sbr.rel (0) target = $region45
    $region44: #{tpu_custom_call.1} parent=1 // pred_region
      %s283 = ssub.s32 128, 128
      %284 = vsyncadd [#allocation4], %s283
      %s286 = sshll.u32 [#allocation8], 4
      %s287 = int_to_ptr.vmem [resolvable:$true] %s286
      %289 = dma.vmem_to_hbm [thread:$0]  %s287, 128, %s7, [#allocation4]
    $region45: #{tpu_custom_call.1} parent=1 // pred_fallthru
      _
    // Predicated region
    $region46: #{tpu_custom_call.1} parent=1 // pred_check
      _
    $region47: #{tpu_custom_call.1} parent=1 // pred_check_branch
      %291 = sbr.rel (0) target = $region49
    $region48: #{tpu_custom_call.1} parent=1 // pred_region
      %292 = dma.done [#allocation4], 128
    $region49: #{tpu_custom_call.1} parent=1 // pred_fallthru
      _
    %293 = vsyncpa [#allocation3], 1
    %294 = vsyncpa [#allocation6], 1
    %295 = vsyncpa [#allocation4], 1

</llo_original>
